<compile_context>
chip_gen: v6e
topology: v6e:2x2x1
jax: 0.10.0
libtpu: 0.0.40
codegen_flags: <defaults>
</compile_context>

<pallas_src>
import jax
import jax.numpy as jnp
from jax.experimental import pallas as pl
from jax.experimental.pallas import tpu as pltpu

LANES = 128          # lane width of a vreg
ACC_ROWS = 8         # (8, 128) f32 vector accumulator = one vreg
BIG_TILE_ROWS = 1024 # up to (1024, 128) per block (512 KiB f32)


def _prep(w):
    """Flatten a weight to a lane-dense 2D slab in its NATIVE dtype.

    Returns (x2d, rows, tile_rows, num_tiles). Zero padding is inert because
    the kernel mask is strictly `x < 0`.
    """
    flat = w.reshape(-1)
    n = int(flat.shape[0])
    dtype = flat.dtype
    itemsize = dtype.itemsize
    # sublane packing granularity: 8 (f32) / 16 (bf16) / 32 (int8/fp8)
    row_align = max(8, 32 // max(1, itemsize))

    if n == 0:
        # Empty tensor: torch's norm of an empty tensor is 0. An all-zero slab
        # contributes nothing (0 is not < 0), keeping the kernel uniform.
        return jnp.zeros((row_align, LANES), dtype=dtype), row_align, row_align, 1

    gran = row_align * LANES
    padded_n = ((n + gran - 1) // gran) * gran
    if padded_n != n:
        flat = jnp.pad(flat, (0, padded_n - n))  # minimal, native-dtype pad

    rows = padded_n // LANES
    x2d = flat.reshape(rows, LANES)
    tile_rows = min(BIG_TILE_ROWS, rows)          # multiple of 8, or == rows
    num_tiles = pl.cdiv(rows, tile_rows)
    return x2d, rows, tile_rows, num_tiles


def negative_weights_norm_loss(weight_e, weight_i):
    """|| w_e[w_e<0] ||_2 + || w_i[w_i<0] ||_2 via one fused Pallas kernel."""
    xe, rows_e, tr_e, tiles_e = _prep(weight_e)
    xi, rows_i, tr_i, tiles_i = _prep(weight_i)
    total_tiles = tiles_e + tiles_i

    # Whether the last block of each weight extends past the array (needs a
    # row mask against garbage from the out-of-bounds boundary block).
    ragged_e = (rows_e % tr_e) != 0
    ragged_i = (rows_i % tr_i) != 0

    def kernel(xe_ref, xi_ref, out_ref, acc_e_ref, acc_i_ref):
        step = pl.program_id(0)

        @pl.when(step == 0)
        def _init():
            acc_e_ref[...] = jnp.zeros_like(acc_e_ref)
            acc_i_ref[...] = jnp.zeros_like(acc_i_ref)

        def tile_partial(x_ref, local_tile, tile_rows, valid_rows, ragged):
            # VPU-only work per tile: cast, mask, square, fold into (8,128).
            x = x_ref[...].astype(jnp.float32)
            keep = x < 0.0
            if ragged:  # static: only emitted when a boundary block exists
                row0 = local_tile * tile_rows
                ridx = jax.lax.broadcasted_iota(jnp.int32, x.shape, 0) + row0
                keep = keep & (ridx < valid_rows)
            neg = jnp.where(keep, x, 0.0)
            sq = neg * neg
            # (tile_rows,128) -> (tile_rows/8, 8, 128): layout-free; summing
            # axis 0 is plain vreg adds (no cross-lane XLU work per tile).
            return jnp.sum(sq.reshape(-1, ACC_ROWS, LANES), axis=0)

        @pl.when(step < tiles_e)
        def _acc_e():
            acc_e_ref[...] += tile_partial(xe_ref, step, tr_e, rows_e, ragged_e)

        @pl.when(step >= tiles_e)
        def _acc_i():
            acc_i_ref[...] += tile_partial(
                xi_ref, step - tiles_e, tr_i, rows_i, ragged_i)

        @pl.when(step == pl.num_programs(0) - 1)
        def _finalize():
            # Cross-lane reduce + sqrt only once, at the very end.
            out_ref[0, 0] = jnp.sqrt(jnp.sum(acc_e_ref[...]))
            out_ref[0, 1] = jnp.sqrt(jnp.sum(acc_i_ref[...]))

    bytes_in = xe.size * xe.dtype.itemsize + xi.size * xi.dtype.itemsize
    cost = pl.CostEstimate(
        flops=3 * (xe.size + xi.size),   # cmp + mul + add per element
        transcendentals=2,               # two sqrts in the epilogue
        bytes_accessed=bytes_in + 8,
    )

    out = pl.pallas_call(
        kernel,
        out_shape=jax.ShapeDtypeStruct((1, 2), jnp.float32),
        grid_spec=pltpu.PrefetchScalarGridSpec(
            num_scalar_prefetch=0,
            grid=(total_tiles,),
            in_specs=[
                # Clamp block indices so the inactive input never changes its
                # block -> Pallas elides the DMA for it ("revisit").
                pl.BlockSpec((tr_e, LANES),
                             lambda i: (jnp.minimum(i, tiles_e - 1), 0)),
                pl.BlockSpec((tr_i, LANES),
                             lambda i: (jnp.maximum(i - tiles_e, 0), 0)),
            ],
            out_specs=pl.BlockSpec(memory_space=pltpu.SMEM),
            scratch_shapes=[
                pltpu.VMEM((ACC_ROWS, LANES), jnp.float32),  # acc for w_e
                pltpu.VMEM((ACC_ROWS, LANES), jnp.float32),  # acc for w_i
            ],
        ),
        compiler_params=pltpu.CompilerParams(
            dimension_semantics=("arbitrary",)),  # carried reduction
        cost_estimate=cost,
    )(xe, xi)

    return out[0, 0] + out[0, 1]


def _reference(weight_e, weight_i):
    def ref_norm(w):
        w = w.astype(jnp.float32)
        sq = jnp.where(w < 0.0, w * w, 0.0)
        return jnp.sqrt(jnp.sum(sq))
    return ref_norm(weight_e) + ref_norm(weight_i)


if __name__ == "__main__":
    key = jax.random.PRNGKey(0)
    k_e, k_i, k_a, k_b = jax.random.split(key, 4)

    # Spec-consistent small parameters:
    #   weight_e : excitatory conv-style weight, OIHW = (4, 4, 3, 3)
    #   weight_i : inhibitory linear-style weight, (32, 16)
    weight_e = jax.random.normal(k_e, (4, 4, 3, 3), dtype=jnp.float32)
    weight_i = jax.random.normal(k_i, (32, 16), dtype=jnp.float32)

    loss = negative_weights_norm_loss(weight_e, weight_i)
    loss = jax.block_until_ready(loss)
    ref = _reference(weight_e, weight_i)
    assert jnp.allclose(loss, ref, rtol=1e-5, atol=1e-5), (loss, ref)

    # Exercise the multi-tile + ragged boundary-block path as well.
    weight_a = jax.random.normal(k_a, (1025, 130), dtype=jnp.float32)
    weight_b = jax.random.normal(k_b, (7, 5), dtype=jnp.float32)
    loss2 = jax.block_until_ready(negative_weights_norm_loss(weight_a, weight_b))
    ref2 = _reference(weight_a, weight_b)
    assert jnp.allclose(loss2, ref2, rtol=1e-4, atol=1e-4), (loss2, ref2)

    print("KERNEL_OK")
</pallas_src>

<mosaic_0001>
module attributes {stable_mosaic.version = 11 : i64} {
  func.func @kernel(%arg0: i32, %arg1: memref<8x128xf32, #tpu.memory_space<vmem>>, %arg2: memref<8x128xf32, #tpu.memory_space<vmem>>, %arg3: memref<1x2xf32, #tpu.memory_space<smem>>, %arg4: memref<8x128xf32, #tpu.memory_space<vmem>>, %arg5: memref<8x128xf32, #tpu.memory_space<vmem>>) attributes {dimension_semantics = [#tpu.dimension_semantics<arbitrary>], iteration_bounds = array<i64: 2>, scalar_prefetch = 0 : i64, scratch_operands = 2 : i64, tpu.core_type = #tpu.core_type<tc>, window_params = [{transform_indices = @transform_0, window_bounds = array<i64: 8, 128>}, {transform_indices = @transform_1, window_bounds = array<i64: 8, 128>}, {transform_indices = @transform_2, window_bounds = array<i64: 1, 2>}]} {
    %c0_i32 = arith.constant 0 : i32
    %0 = arith.cmpi eq, %arg0, %c0_i32 : i32
    %1 = arith.extui %0 : i1 to i32
    %c0_i32_0 = arith.constant 0 : i32
    %2 = arith.cmpi ne, %1, %c0_i32_0 : i32
    scf.if %2 {
      %cst = arith.constant 0.000000e+00 : f32
      %12 = vector.broadcast %cst : f32 to vector<8x128xf32>
      %c0 = arith.constant 0 : index
      %c0_6 = arith.constant 0 : index
      %13 = vector.load %arg4[%c0, %c0_6] : memref<8x128xf32, #tpu.memory_space<vmem>>, vector<8x128xf32>
      tpu.vector_store %arg4[%c0, %c0_6], %12 {strides = array<i32>} : memref<8x128xf32, #tpu.memory_space<vmem>>, vector<8x128xf32>,
      %cst_7 = arith.constant 0.000000e+00 : f32
      %14 = vector.broadcast %cst_7 : f32 to vector<8x128xf32>
      %c0_8 = arith.constant 0 : index
      %c0_9 = arith.constant 0 : index
      %15 = vector.load %arg5[%c0_8, %c0_9] : memref<8x128xf32, #tpu.memory_space<vmem>>, vector<8x128xf32>
      tpu.vector_store %arg5[%c0_8, %c0_9], %14 {strides = array<i32>} : memref<8x128xf32, #tpu.memory_space<vmem>>, vector<8x128xf32>,
    } else {
    }
    %c1_i32 = arith.constant 1 : i32
    %3 = arith.cmpi slt, %arg0, %c1_i32 : i32
    %4 = arith.extui %3 : i1 to i32
    %c0_i32_1 = arith.constant 0 : i32
    %5 = arith.cmpi ne, %4, %c0_i32_1 : i32
    scf.if %5 {
      %c0 = arith.constant 0 : index
      %c0_6 = arith.constant 0 : index
      %12 = vector.load %arg4[%c0, %c0_6] : memref<8x128xf32, #tpu.memory_space<vmem>>, vector<8x128xf32>
      %c0_7 = arith.constant 0 : index
      %c0_8 = arith.constant 0 : index
      %13 = vector.load %arg1[%c0_7, %c0_8] : memref<8x128xf32, #tpu.memory_space<vmem>>, vector<8x128xf32>
      %cst = arith.constant 0.000000e+00 : f32
      %14 = vector.broadcast %cst : f32 to vector<8x128xf32>
      %15 = arith.cmpf olt, %13, %14 : vector<8x128xf32>
      %cst_9 = arith.constant 0.000000e+00 : f32
      %16 = vector.broadcast %cst_9 : f32 to vector<8x128xf32>
      %17 = arith.select %15, %13, %16 : vector<8x128xi1>, vector<8x128xf32>
      %18 = arith.mulf %17, %17 : vector<8x128xf32>
      %19 = vector.shape_cast %18 : vector<8x128xf32> to vector<1x8x128xf32>
      %cst_10 = arith.constant dense<0.000000e+00> : vector<8x128xf32>
      %20 = vector.multi_reduction <add>, %19, %cst_10 [0] : vector<1x8x128xf32> to vector<8x128xf32>
      %21 = arith.addf %12, %20 : vector<8x128xf32>
      %c0_11 = arith.constant 0 : index
      %c0_12 = arith.constant 0 : index
      %22 = vector.load %arg4[%c0_11, %c0_12] : memref<8x128xf32, #tpu.memory_space<vmem>>, vector<8x128xf32>
      tpu.vector_store %arg4[%c0_11, %c0_12], %21 {strides = array<i32>} : memref<8x128xf32, #tpu.memory_space<vmem>>, vector<8x128xf32>,
    } else {
    }
    %c1_i32_2 = arith.constant 1 : i32
    %6 = arith.cmpi sge, %arg0, %c1_i32_2 : i32
    %7 = arith.extui %6 : i1 to i32
    %c0_i32_3 = arith.constant 0 : i32
    %8 = arith.cmpi ne, %7, %c0_i32_3 : i32
    scf.if %8 {
      %c0 = arith.constant 0 : index
      %c0_6 = arith.constant 0 : index
      %12 = vector.load %arg5[%c0, %c0_6] : memref<8x128xf32, #tpu.memory_space<vmem>>, vector<8x128xf32>
      %c0_7 = arith.constant 0 : index
      %c0_8 = arith.constant 0 : index
      %13 = vector.load %arg2[%c0_7, %c0_8] : memref<8x128xf32, #tpu.memory_space<vmem>>, vector<8x128xf32>
      %cst = arith.constant 0.000000e+00 : f32
      %14 = vector.broadcast %cst : f32 to vector<8x128xf32>
      %15 = arith.cmpf olt, %13, %14 : vector<8x128xf32>
      %cst_9 = arith.constant 0.000000e+00 : f32
      %16 = vector.broadcast %cst_9 : f32 to vector<8x128xf32>
      %17 = arith.select %15, %13, %16 : vector<8x128xi1>, vector<8x128xf32>
      %18 = arith.mulf %17, %17 : vector<8x128xf32>
      %19 = vector.shape_cast %18 : vector<8x128xf32> to vector<1x8x128xf32>
      %cst_10 = arith.constant dense<0.000000e+00> : vector<8x128xf32>
      %20 = vector.multi_reduction <add>, %19, %cst_10 [0] : vector<1x8x128xf32> to vector<8x128xf32>
      %21 = arith.addf %12, %20 : vector<8x128xf32>
      %c0_11 = arith.constant 0 : index
      %c0_12 = arith.constant 0 : index
      %22 = vector.load %arg5[%c0_11, %c0_12] : memref<8x128xf32, #tpu.memory_space<vmem>>, vector<8x128xf32>
      tpu.vector_store %arg5[%c0_11, %c0_12], %21 {strides = array<i32>} : memref<8x128xf32, #tpu.memory_space<vmem>>, vector<8x128xf32>,
    } else {
    }
    %c1_i32_4 = arith.constant 1 : i32
    %9 = arith.cmpi eq, %arg0, %c1_i32_4 : i32
    %10 = arith.extui %9 : i1 to i32
    %c0_i32_5 = arith.constant 0 : i32
    %11 = arith.cmpi ne, %10, %c0_i32_5 : i32
    scf.if %11 {
      %c0 = arith.constant 0 : index
      %c0_6 = arith.constant 0 : index
      %12 = vector.load %arg4[%c0, %c0_6] : memref<8x128xf32, #tpu.memory_space<vmem>>, vector<8x128xf32>
      %13 = vector.shape_cast %12 : vector<8x128xf32> to vector<1x8x128xf32>
      %cst = arith.constant dense<0.000000e+00> : vector<1xf32>
      %14 = vector.multi_reduction <add>, %13, %cst [1, 2] : vector<1x8x128xf32> to vector<1xf32>
      %15 = vector.shape_cast %14 : vector<1xf32> to vector<1x1x1xf32>
      %16 = vector.extract %15[0, 0, 0] : f32 from vector<1x1x1xf32>
      %17 = math.sqrt %16 : f32
      %c0_7 = arith.constant 0 : index
      %c0_8 = arith.constant 0 : index
      %18 = memref.load %arg3[%c0_7, %c0_8] : memref<1x2xf32, #tpu.memory_space<smem>>
      memref.store %17, %arg3[%c0_7, %c0_8] : memref<1x2xf32, #tpu.memory_space<smem>>
      %c0_9 = arith.constant 0 : index
      %c0_10 = arith.constant 0 : index
      %19 = vector.load %arg5[%c0_9, %c0_10] : memref<8x128xf32, #tpu.memory_space<vmem>>, vector<8x128xf32>
      %20 = vector.shape_cast %19 : vector<8x128xf32> to vector<1x8x128xf32>
      %cst_11 = arith.constant dense<0.000000e+00> : vector<1xf32>
      %21 = vector.multi_reduction <add>, %20, %cst_11 [1, 2] : vector<1x8x128xf32> to vector<1xf32>
      %22 = vector.shape_cast %21 : vector<1xf32> to vector<1x1x1xf32>
      %23 = vector.extract %22[0, 0, 0] : f32 from vector<1x1x1xf32>
      %24 = math.sqrt %23 : f32
      %c0_12 = arith.constant 0 : index
      %c1 = arith.constant 1 : index
      %25 = memref.load %arg3[%c0_12, %c1] : memref<1x2xf32, #tpu.memory_space<smem>>
      memref.store %24, %arg3[%c0_12, %c1] : memref<1x2xf32, #tpu.memory_space<smem>>
    } else {
    }
    return
  }
  func.func @transform_0(%arg0: i32) -> (i32, i32) {
    %c0_i32 = arith.constant 0 : i32
    %0 = arith.minsi %arg0, %c0_i32 : i32
    %c0_i32_0 = arith.constant 0 : i32
    %c0_i32_1 = arith.constant 0 : i32
    return %0, %c0_i32_0 : i32, i32
  }
  func.func @transform_1(%arg0: i32) -> (i32, i32) {
    %c1_i32 = arith.constant 1 : i32
    %0 = arith.subi %arg0, %c1_i32 : i32
    %c0_i32 = arith.constant 0 : i32
    %1 = arith.maxsi %0, %c0_i32 : i32
    %c0_i32_0 = arith.constant 0 : i32
    %c0_i32_1 = arith.constant 0 : i32
    return %1, %c0_i32_0 : i32, i32
  }
  func.func @transform_2(%arg0: i32) -> (i32, i32) {
    %c0_i32 = arith.constant 0 : i32
    %c0_i32_0 = arith.constant 0 : i32
    %c0_i32_1 = arith.constant 0 : i32
    return %c0_i32, %c0_i32_0 : i32, i32
  }
}

</mosaic_0001>

<llo_original>
// kernel: tpu_custom_call.1
$region0: #{tpu_custom_call.1}
  #allocation0 [shape = 'u32[]', space=smem, size = 0x4, offset = 0x4, fixed_abs, tag = 'smem constant byte address 0x4 - core index']
  #allocation1 [shape = 'u32[144,128]{1,0:T(1,128)}', space=vmem, size = 0x12000, scoped, tag = 'internal scratch']
  #allocation2 [shape = 'f32[8,128]{1,0:T(8,128)}', space=vmem, size = 0x1000, scoped, tag = 'scratch operand']
  #allocation3 [shape = 'f32[8,128]{1,0:T(8,128)}', space=vmem, size = 0x1000, scoped, tag = 'scratch operand']
  %s0 = inlined_call_operand.hbm [shape: f32[8,128], index: 0, kind: input, shape index: {}]
  %s1 = inlined_call_operand.hbm [shape: f32[8,128], index: 1, kind: input, shape index: {}]
  %s2 = inlined_call_operand.hbm [shape: f32[1,2], index: 2, kind: output, shape index: {}]
  %s3 = sld [smem:[#allocation0]]
  $region65: #{tpu_custom_call.1} parent=0
    _
  %s5 = ssub.s32 1, %s3
  %s6 = scalar_select 0, %s5, %s3
  $region1: #{tpu_custom_call.1} parent=0
    #allocation4 [shape = 'u8[8192]{0}', space=vmem, size = 0x2000, scoped, tag = 'input window, operand 0']
    #allocation5 [shape = 's32[2]{0}', space=sflag, size = 0x8, scoped, tag = 'scoped memory for tpu_custom_call.1']
    #allocation6 [shape = 's32[2]{0}', space=sflag, size = 0x8, scoped, tag = 'scoped memory for tpu_custom_call.1']
    #allocation7 [shape = 'u8[8192]{0}', space=vmem, size = 0x2000, scoped, tag = 'input window, operand 1']
    #allocation8 [shape = 's32[2]{0}', space=sflag, size = 0x8, scoped, tag = 'scoped memory for tpu_custom_call.1']
    #allocation9 [shape = 'u8[512]{0}', space=smem, size = 0x200, scoped, tag = 'output window, operand 0, single buffered']
    %7 = vsyncpa [#allocation5], 0
    %s8 = scalar_lea.sflag [#allocation5], 1
    %9 = vsyncpa %s8, 0
    %10 = vsyncpa [#allocation8], 0
    %s11 = scalar_lea.sflag [#allocation8], 1
    %12 = vsyncpa %s11, 0
    %13 = vsyncpa [#allocation6], 0
    loop: start=0, step=1, limit=4
    $region2: #{tpu_custom_call.1} parent=1 // loop_pre_header
      _
    $region3: #{tpu_custom_call.1} parent=1 // loop_header
      %s15 = sphi 0, %s19
      %p16 = scmp.ge.s32.totalorder %s15, 4
      %s29 = sphi 0, %s31
      %s32 = sphi 0, %s29
      %s33 = sphi 0, %s32
      %s49 = sphi 0, %s33
      %s61 = sphi 0, %s63
      %s64 = sphi 0, %s61
      %s65 = sphi 0, %s64
      %s81 = sphi 0, %s65
      %s85 = sphi 0, %s85
      %s87 = sphi 0, %s85
      %s88 = sphi 0, %s87
      %s102 = sphi 0, %s88
    $region4: #{tpu_custom_call.1} parent=1 // loop_header_branch
      %18 = sbr.rel (%p16) target = $region8
    $region5: #{tpu_custom_call.1} parent=1 // loop_body
      %s20 = ssub.s32 %s15, 1
      %s21 = ssub.s32 %s15, 2
      %s22 = sadd.s32 %s15, 1
      %p23 = scmp.lt.s32.totalorder %s15, 0
      %s24 = scalar_select %p23, %s15, 0
      %p25 = scmp.lt.s32.totalorder %s22, 0
      %s26 = scalar_select %p25, %s22, 0
      %s27 = ssub.s32 %s24, %s26
      %p28 = scmp.eq.s32.totalorder %s27, 0
      %s30 = sadd.s32 %s29, 1
      %s31 = scalar_select %p28, %s29, %s30
      %p34 = pneg %p28
      %p35 = scmp.eq.s32.totalorder %s15, 1
      %p36 = por %p34, %p35
      %p37 = scmp.ne.s32.totalorder %s29, %s32
      %p38 = scmp.eq.s32.totalorder %s15, 0
      %p39 = por %p37, %p38
      %p40 = scmp.ne.s32.totalorder %s29, %s32
      %p41 = scmp.eq.s32.totalorder %s20, 1
      %p42 = por %p40, %p41
      %p43 = scmp.ne.s32.totalorder %s32, %s33
      %p44 = scmp.eq.s32.totalorder %s20, 0
      %p45 = por %p43, %p44
      %p46 = scmp.ne.s32.totalorder %s32, %s33
      %p47 = scmp.eq.s32.totalorder %s21, 1
      %p48 = por %p46, %p47
      %p50 = scmp.ne.s32.totalorder %s33, %s49
      %p51 = scmp.eq.s32.totalorder %s21, 0
      %p52 = por %p50, %p51
      %s53 = ssub.s32 %s15, 1
      %p54 = scmp.gt.s32.totalorder %s53, 0
      %s55 = scalar_select %p54, %s53, 0
      %s56 = ssub.s32 %s22, 1
      %p57 = scmp.gt.s32.totalorder %s56, 0
      %s58 = scalar_select %p57, %s56, 0
      %s59 = ssub.s32 %s55, %s58
      %p60 = scmp.eq.s32.totalorder %s59, 0
      %s62 = sadd.s32 %s61, 1
      %s63 = scalar_select %p60, %s61, %s62
      %p66 = pneg %p60
      %p67 = scmp.eq.s32.totalorder %s15, 1
      %p68 = por %p66, %p67
      %p69 = scmp.ne.s32.totalorder %s61, %s64
      %p70 = scmp.eq.s32.totalorder %s15, 0
      %p71 = por %p69, %p70
      %p72 = scmp.ne.s32.totalorder %s61, %s64
      %p73 = scmp.eq.s32.totalorder %s20, 1
      %p74 = por %p72, %p73
      %p75 = scmp.ne.s32.totalorder %s64, %s65
      %p76 = scmp.eq.s32.totalorder %s20, 0
      %p77 = por %p75, %p76
      %p78 = scmp.ne.s32.totalorder %s64, %s65
      %p79 = scmp.eq.s32.totalorder %s21, 1
      %p80 = por %p78, %p79
      %p82 = scmp.ne.s32.totalorder %s65, %s81
      %p83 = scmp.eq.s32.totalorder %s21, 0
      %p84 = por %p82, %p83
      %s86 = sadd.s32 %s85, 1
      %p89 = scmp.eq.s32.totalorder %s15, 1
      %p90 = scmp.ne.s32.totalorder %s85, %s87
      %p91 = scmp.eq.s32.totalorder %s15, 0
      %p92 = por %p90, %p91
      %p93 = scmp.ne.s32.totalorder %s85, %s87
      %p94 = scmp.eq.s32.totalorder %s20, 1
      %p95 = por %p93, %p94
      %p96 = scmp.ne.s32.totalorder %s87, %s88
      %p97 = scmp.eq.s32.totalorder %s20, 0
      %p98 = por %p96, %p97
      %p99 = scmp.ne.s32.totalorder %s87, %s88
      %p100 = scmp.eq.s32.totalorder %s21, 1
      %p101 = por %p99, %p100
      %p103 = scmp.ne.s32.totalorder %s88, %s102
      %p104 = scmp.eq.s32.totalorder %s21, 0
      %p105 = por %p103, %p104
      %p106 = scmp.le.s32.totalorder 1, %s15
      %p107 = scmp.lt.s32.totalorder %s15, 3
      %p108 = pnand %p106, %p107
      %p109 = pneg %p108
      // Predicated region
      $region9: #{tpu_custom_call.1} parent=5 // pred_check
        _
      $region10: #{tpu_custom_call.1} parent=5 // pred_check_branch
        %111 = sbr.rel (%p108) target = $region12
      $region11: #{tpu_custom_call.1} parent=5 // pred_region
        %s112 = ssub.s32 %s15, 1
      $region12: #{tpu_custom_call.1} parent=5 // pred_fallthru
        _
      %p113 = scmp.lt.s32.totalorder %s15, 2
      // Predicated region
      $region13: #{tpu_custom_call.1} parent=5 // pred_check
        %p114 = pneg %p113
      $region14: #{tpu_custom_call.1} parent=5 // pred_check_branch
        %116 = sbr.rel (%p114) target = $region16
      $region15: #{tpu_custom_call.1} parent=5 // pred_region
        // Predicated region
        $region17: #{tpu_custom_call.1} parent=15 // pred_check
          %p117 = pneg %p39
        $region18: #{tpu_custom_call.1} parent=15 // pred_check_branch
          %119 = sbr.rel (%p117) target = $region20
        $region19: #{tpu_custom_call.1} parent=15 // pred_region
          %s120 = sand.u32 %s29, 1
          %s121 = scalar_lea.sflag [#allocation5], %s120
          %s122 = sand.u32 %s29, 1
          %s123 = smul.addr %s122, 8
          %s124 = scalar_lea.vmem [#allocation4], %s123
          %p125 = scmp.lt.s32.totalorder %s15, 0
          %s126 = scalar_select %p125, %s15, 0
          %s128 = ssub.s32 128, 128
          %129 = vsyncadd %s121, %s128
          %s130 = smul.addr %s126, 128
          %s131 = scalar_lea.hbm %s0, %s130
          %s133 = sshll.u32 %s124, 4
          %s134 = int_to_ptr.vmem [resolvable:$true] %s133
          %136 = dma.hbm_to_vmem [thread:$0]  %s131, 128, %s134, %s121
        $region20: #{tpu_custom_call.1} parent=15 // pred_fallthru
          _
        // Predicated region
        $region21: #{tpu_custom_call.1} parent=15 // pred_check
          %p137 = pneg %p71
        $region22: #{tpu_custom_call.1} parent=15 // pred_check_branch
          %139 = sbr.rel (%p137) target = $region24
        $region23: #{tpu_custom_call.1} parent=15 // pred_region
          %s140 = sand.u32 %s61, 1
          %s141 = scalar_lea.sflag [#allocation8], %s140
          %s142 = sand.u32 %s61, 1
          %s143 = smul.addr %s142, 8
          %s144 = scalar_lea.vmem [#allocation7], %s143
          %s145 = ssub.s32 %s15, 1
          %p146 = scmp.gt.s32.totalorder %s145, 0
          %s147 = scalar_select %p146, %s145, 0
          %s149 = ssub.s32 128, 128
          %150 = vsyncadd %s141, %s149
          %s151 = smul.addr %s147, 128
          %s152 = scalar_lea.hbm %s1, %s151
          %s154 = sshll.u32 %s144, 4
          %s155 = int_to_ptr.vmem [resolvable:$true] %s154
          %157 = dma.hbm_to_vmem [thread:$0]  %s152, 128, %s155, %s141
        $region24: #{tpu_custom_call.1} parent=15 // pred_fallthru
          _
      $region16: #{tpu_custom_call.1} parent=5 // pred_fallthru
        _
      %p158 = scmp.le.s32.totalorder 1, %s15
      %p159 = scmp.lt.s32.totalorder %s15, 3
      %p160 = pnand %p158, %p159
      %p161 = pneg %p160
      // Predicated region
      $region25: #{tpu_custom_call.1} parent=5 // pred_check
        _
      $region26: #{tpu_custom_call.1} parent=5 // pred_check_branch
        %163 = sbr.rel (%p160) target = $region28
      $region27: #{tpu_custom_call.1} parent=5 // pred_region
        %s164 = ssub.s32 %s15, 1
        %s165 = sand.u32 %s32, 1
        %s166 = scalar_lea.sflag [#allocation5], %s165
        %s167 = sand.u32 %s32, 1
        %s168 = smul.addr %s167, 8
        %s169 = scalar_lea.vmem [#allocation4], %s168
        // Predicated region
        $region29: #{tpu_custom_call.1} parent=27 // pred_check
          %p170 = pneg %p45
        $region30: #{tpu_custom_call.1} parent=27 // pred_check_branch
          %172 = sbr.rel (%p170) target = $region32
        $region31: #{tpu_custom_call.1} parent=27 // pred_region
          %173 = dma.done %s166, 128
        $region32: #{tpu_custom_call.1} parent=27 // pred_fallthru
          _
        %s174 = sand.u32 %s64, 1
        %s175 = scalar_lea.sflag [#allocation8], %s174
        %s176 = sand.u32 %s64, 1
        %s177 = smul.addr %s176, 8
        %s178 = scalar_lea.vmem [#allocation7], %s177
        // Predicated region
        $region33: #{tpu_custom_call.1} parent=27 // pred_check
          %p179 = pneg %p77
        $region34: #{tpu_custom_call.1} parent=27 // pred_check_branch
          %181 = sbr.rel (%p179) target = $region36
        $region35: #{tpu_custom_call.1} parent=27 // pred_region
          %182 = dma.done %s175, 128
        $region36: #{tpu_custom_call.1} parent=27 // pred_fallthru
          _
        %s183 = sand.u32 %s32, 1
        %s184 = scalar_lea.sflag [#allocation5], %s183
        %s185 = sand.u32 %s32, 1
        %s186 = smul.addr %s185, 8
        %s187 = scalar_lea.vmem [#allocation4], %s186
        %p188 = pneg %p45
        %p189 = pneg %p42
        %s190 = sand.u32 %s64, 1
        %s191 = scalar_lea.sflag [#allocation8], %s190
        %s192 = sand.u32 %s64, 1
        %s193 = smul.addr %s192, 8
        %s194 = scalar_lea.vmem [#allocation7], %s193
        %p195 = pneg %p77
        %p196 = pneg %p74
        %p197 = pneg %p98
        %p198 = pneg %p95
        %p199 = scmp.lt.s32.totalorder %s20, 0
        %s200 = scalar_select %p199, %s20, 0
        %s201 = ssub.s32 %s20, 1
        %p202 = scmp.gt.s32.totalorder %s201, 0
        %s203 = scalar_select %p202, %s201, 0
        %p204 = scmp.eq.s32.totalorder %s20, 0
        // Predicated region
        $region37: #{tpu_custom_call.1} parent=27 // pred_check
          %p205 = pneg %p204
        $region38: #{tpu_custom_call.1} parent=27 // pred_check_branch
          %207 = sbr.rel (%p205) target = $region40
        $region39: #{tpu_custom_call.1} parent=27 // pred_region
          %208 = vst [vmem:[#allocation2] sm:$0xff] 0.0
          %209 = vst [vmem:[#allocation3] sm:$0xff] 0.0
        $region40: #{tpu_custom_call.1} parent=27 // pred_fallthru
          _
        %p210 = scmp.lt.s32.totalorder %s20, 1
        // Predicated region
        $region41: #{tpu_custom_call.1} parent=27 // pred_check
          %p211 = pneg %p210
        $region42: #{tpu_custom_call.1} parent=27 // pred_check_branch
          %213 = sbr.rel (%p211) target = $region44
        $region43: #{tpu_custom_call.1} parent=27 // pred_region
          %v214 = vld [vmem:[#allocation2] sm:$0xff]
          %v215 = vld [vmem:[%s169] sm:$0xff]
          %vm216 = vcmp.lt.f32.partialorder %v215, 0.0
          %v217 = vsel %vm216, %v215, 0.0
          %v218 = vmul.f32 %v217, %v217
          %v219 = vadd.f32 %v218, 0.0
          %v220 = vadd.f32 %v214, %v219
          %221 = vst [vmem:[#allocation2] sm:$0xff] %v220
        $region44: #{tpu_custom_call.1} parent=27 // pred_fallthru
          _
        %p222 = scmp.ge.s32.totalorder %s20, 1
        // Predicated region
        $region45: #{tpu_custom_call.1} parent=27 // pred_check
          %p223 = pneg %p222
        $region46: #{tpu_custom_call.1} parent=27 // pred_check_branch
          %225 = sbr.rel (%p223) target = $region48
        $region47: #{tpu_custom_call.1} parent=27 // pred_region
          %v226 = vld [vmem:[#allocation3] sm:$0xff]
          %v227 = vld [vmem:[%s178] sm:$0xff]
          %vm228 = vcmp.lt.f32.partialorder %v227, 0.0
          %v229 = vsel %vm228, %v227, 0.0
          %v230 = vmul.f32 %v229, %v229
          %v231 = vadd.f32 %v230, 0.0
          %v232 = vadd.f32 %v226, %v231
          %233 = vst [vmem:[#allocation3] sm:$0xff] %v232
        $region48: #{tpu_custom_call.1} parent=27 // pred_fallthru
          _
        %p234 = scmp.eq.s32.totalorder %s20, 1
        // Predicated region
        $region49: #{tpu_custom_call.1} parent=27 // pred_check
          %p235 = pneg %p234
        $region50: #{tpu_custom_call.1} parent=27 // pred_check_branch
          %237 = sbr.rel (%p235) target = $region52
        $region51: #{tpu_custom_call.1} parent=27 // pred_region
          %v238 = vld [vmem:[#allocation2] sm:$0xff]
          %239 = vadd.xlane.f32.xlu0 %v238
          %v240 = vpop.xlane.xlu0 %239
          %v241 = vrot.slane %v240, 4
          %v242 = vadd.f32 %v240, %v241
          %v243 = vrot.slane %v242, 2
          %v244 = vadd.f32 %v242, %v243
          %v245 = vrot.slane %v244, 1
          %v246 = vadd.f32 %v244, %v245
          %s247 = vtos %v246
          %v248 = vstv %s247
          %v249 = vrsqrt.pop %v248
          %v250 = vmul.f32 %v248, %v249
          %vm251 = vcmp.eq.f32.partialorder %v248, inf
          %v252 = vsel %vm251, %v248, %v250
          %vm253 = vcmp.eq.f32.partialorder %v248, 0.0
          %v254 = vand.u32 %v248, 2147483648
          %v255 = vsel %vm253, %v254, %v252
          %s256 = vtos %v255
          %s257 = scalar_lea.smem [#allocation9], 0
          %258 = sst [smem:[%s257]] %s256
          %v259 = vld [vmem:[#allocation3] sm:$0xff]
          %260 = vadd.xlane.f32.xlu0 %v259
          %v261 = vpop.xlane.xlu0 %260
          %v262 = vrot.slane %v261, 4
          %v263 = vadd.f32 %v261, %v262
          %v264 = vrot.slane %v263, 2
          %v265 = vadd.f32 %v263, %v264
          %v266 = vrot.slane %v265, 1
          %v267 = vadd.f32 %v265, %v266
          %s268 = vtos %v267
          %v269 = vstv %s268
          %v270 = vrsqrt.pop %v269
          %v271 = vmul.f32 %v269, %v270
          %vm272 = vcmp.eq.f32.partialorder %v269, inf
          %v273 = vsel %vm272, %v269, %v271
          %vm274 = vcmp.eq.f32.partialorder %v269, 0.0
          %v275 = vand.u32 %v269, 2147483648
          %v276 = vsel %vm274, %v275, %v273
          %s277 = vtos %v276
          %s278 = scalar_lea.smem [#allocation9], 1
          %279 = sst [smem:[%s278]] %s277
        $region52: #{tpu_custom_call.1} parent=27 // pred_fallthru
          _
        // Predicated region
        $region53: #{tpu_custom_call.1} parent=27 // pred_check
          %p280 = pneg %p95
        $region54: #{tpu_custom_call.1} parent=27 // pred_check_branch
          %282 = sbr.rel (%p280) target = $region56
        $region55: #{tpu_custom_call.1} parent=27 // pred_region
          %s284 = ssub.s32 16, 16
          %285 = vsyncadd [#allocation6], %s284
          %288 = dma.smem_to_hbm [#allocation9], 16, %s2, [#allocation6]
        $region56: #{tpu_custom_call.1} parent=27 // pred_fallthru
          _
        // Predicated region
        $region57: #{tpu_custom_call.1} parent=27 // pred_check
          %p289 = pneg %p95
        $region58: #{tpu_custom_call.1} parent=27 // pred_check_branch
          %291 = sbr.rel (%p289) target = $region60
        $region59: #{tpu_custom_call.1} parent=27 // pred_region
          %292 = dma.done [#allocation6], 16
        $region60: #{tpu_custom_call.1} parent=27 // pred_fallthru
          _
        %293 = sfence
      $region28: #{tpu_custom_call.1} parent=5 // pred_fallthru
        _
      %p294 = scmp.le.s32.totalorder 2, %s15
      // Predicated region
      $region61: #{tpu_custom_call.1} parent=5 // pred_check
        %p295 = pneg %p294
      $region62: #{tpu_custom_call.1} parent=5 // pred_check_branch
        %297 = sbr.rel (%p295) target = $region64
      $region63: #{tpu_custom_call.1} parent=5 // pred_region
        %s298 = ssub.s32 %s15, 2
      $region64: #{tpu_custom_call.1} parent=5 // pred_fallthru
        _
    $region6: #{tpu_custom_call.1} parent=1 // loop_footer
      %s19 = sadd.s32 1, %s15
    $region7: #{tpu_custom_call.1} parent=1 // loop_footer_branch
      %14 = sbr.rel target = $region3
    $region8: #{tpu_custom_call.1} parent=1 // loop_exit
      _
    %299 = vsyncpa [#allocation5], 1
    %s300 = scalar_lea.sflag [#allocation5], 1
    %301 = vsyncpa %s300, 1
    %302 = vsyncpa [#allocation8], 1
    %s303 = scalar_lea.sflag [#allocation8], 1
    %304 = vsyncpa %s303, 1
    %305 = vsyncpa [#allocation6], 1
    %s306 = scalar_lea.sflag [#allocation6], 1
    %307 = vsyncpa %s306, 1

</llo_original>
